<compile_context>
chip_gen: v7x
topology: tpu7x:2x2x1
jax: 0.10.0
libtpu: 0.0.40
codegen_flags: <defaults>
</compile_context>

<pallas_src>
import functools
import math

import jax
import jax.numpy as jnp
from jax.experimental import pallas as pl
from jax.experimental.pallas import tpu as pltpu


def _round_up(x, m):
    return ((x + m - 1) // m) * m


def gvp_kernel(vflat_ref, s_ref, wkron_ref, ssum_ref, egate_ref,
               wms_ref, wmnorm_ref, bm_ref, sdash_ref, vdash_ref, *, eps, mu3):
    """One batch tile of the GVP forward pass (vector_gate=False path).

    vflat_ref  : [TN, 3v]    V with xyz interleaved along lanes (lane 3*j+c = V[:, j, c])
    s_ref      : [TN, n]     scalar inputs
    wkron_ref  : [3v, 3K]    kron([W_vmu^T | W_h^T], I_3), K = mu + h
    ssum_ref   : [3K, K]     0/1 matrix summing xyz triples (squared-norm reduction)
    egate_ref  : [K, 3mu]    0/1 matrix broadcasting the mu-channel gate to xyz lanes
    wms_ref    : [n, m]      scalar part of W_m^T
    wmnorm_ref : [K, m]      norm part of W_m^T (rows for the V_mu norms are zero)
    bm_ref     : [1, m]      W_m bias (constant block, fetched once)
    sdash_ref  : [TN, m]     output scalars
    vdash_ref  : [TN, 3mu]   output vectors (xyz interleaved -> reshapes to [N, mu, 3])
    """
    # One MXU push gives both V_mu (lanes [0, 3mu)) and V_h (lanes [3mu, 3K)).
    vhmu = jnp.dot(vflat_ref[...], wkron_ref[...],
                   preferred_element_type=jnp.float32)              # [TN, 3K] f32

    # Squared norms over xyz via a 0/1 reduction matmul:
    # cols [0, mu) -> ||V_mu||^2, cols [mu, K) -> ||V_h||^2.
    ss = jnp.dot(vhmu * vhmu, ssum_ref[...],
                 preferred_element_type=jnp.float32)                # [TN, K]
    norms = jnp.maximum(jnp.sqrt(ss), eps)                          # clip(norm, min=eps)

    # Scalar path: W_m([s, s_h]) + b, the concat folded into two dots
    # (V_mu-norm rows of wmnorm are zero so only s_h contributes).
    s_m = (jnp.dot(s_ref[...], wms_ref[...], preferred_element_type=jnp.float32)
           + jnp.dot(norms, wmnorm_ref[...], preferred_element_type=jnp.float32)
           + bm_ref[...])                                           # [TN, m] f32
    sdash_ref[...] = jnp.maximum(s_m, 0.0).astype(sdash_ref.dtype)  # sigma = ReLU

    # Vector path: sigmoid(||V_mu||) gate, broadcast across xyz lanes, one store.
    gate = jnp.dot(jax.nn.sigmoid(norms), egate_ref[...],
                   preferred_element_type=jnp.float32)              # [TN, 3mu]
    vdash_ref[...] = (gate * vhmu[:, :mu3]).astype(vdash_ref.dtype)


def gvp_forward(s, V, W_h, W_mu, W_m, b_m, *, eps=1e-4, tn=4096,
                io_dtype=jnp.float32):
    """s: [N, n], V: [N, v, 3] (PyTorch convention). Returns (s_dash, V_dash).

    io_dtype controls the HBM storage dtype of the batched inputs/outputs and
    the big weights (bf16 halves HBM traffic on v6e/v7x); all matmuls accumulate
    in f32 and the nonlinearities run in f32 regardless.
    """
    N, n = s.shape
    v = V.shape[1]
    h = W_h.shape[0]
    mu = W_mu.shape[0]
    m = W_m.shape[0]
    K = mu + h
    f32 = jnp.float32
    io_dtype = jnp.dtype(io_dtype)

    W_h = W_h.astype(f32)
    W_mu = W_mu.astype(f32)
    W_m = W_m.astype(f32)

    # ---- trace-time weight prep (all tiny) -------------------------------
    W_vmu_t = (W_mu @ W_h).T                                        # [v, mu]
    W_chan = jnp.concatenate([W_vmu_t, W_h.T], axis=1)              # [v, K] (V_mu cols first)
    W_kron = jnp.kron(W_chan, jnp.eye(3, dtype=f32)).astype(io_dtype)   # [3v, 3K]
    S_sum = jnp.kron(jnp.eye(K, dtype=f32), jnp.ones((3, 1), f32))      # [3K, K]
    E_gate = jnp.kron(jnp.eye(K, mu, dtype=f32), jnp.ones((1, 3), f32)) # [K, 3mu]
    wm_s = W_m[:, :n].T.astype(io_dtype)                            # [n, m]
    wm_norm = jnp.concatenate(
        [jnp.zeros((mu, m), f32), W_m[:, n:].T], axis=0)            # [K, m] (f32: fed by f32 norms)
    bm = b_m.astype(f32).reshape(1, m)

    # ---- batched inputs (free reshape, no transpose, no padding) ----------
    s_io = s.astype(io_dtype)
    V_flat = V.astype(io_dtype).reshape(N, 3 * v)

    # ---- batch tiling: ragged last block, sublane-aligned, >=2 steps when big
    align = max(8, 32 // io_dtype.itemsize)          # 8 for f32, 16 for bf16
    tn = _round_up(max(align, min(int(tn), N)), align)
    steps = pl.cdiv(N, tn)
    if N >= 1024 and steps < 2:
        steps = 2                                    # let v7x use both TensorCores
    tn = _round_up(pl.cdiv(N, steps), align)         # rebalance tiles
    steps = pl.cdiv(N, tn)

    # ---- advisory cost for XLA scheduling ---------------------------------
    flops_per_row = 2 * (3 * v * 3 * K + 3 * K * K + n * m + K * m + K * 3 * mu)
    weight_bytes = int((W_kron.size + wm_s.size) * io_dtype.itemsize
                       + (S_sum.size + E_gate.size + wm_norm.size + bm.size) * 4)
    cost = pl.CostEstimate(
        flops=int(N) * flops_per_row,
        transcendentals=int(N) * 2 * K,
        bytes_accessed=int(N) * (3 * v + n + m + 3 * mu) * io_dtype.itemsize
        + weight_bytes,
    )

    kernel = functools.partial(gvp_kernel, eps=eps, mu3=3 * mu)
    s_dash, V_dash_flat = pl.pallas_call(
        kernel,
        out_shape=(jax.ShapeDtypeStruct((N, m), io_dtype),
                   jax.ShapeDtypeStruct((N, 3 * mu), io_dtype)),
        grid=(steps,),
        in_specs=[
            pl.BlockSpec((tn, 3 * v), lambda i: (i, 0)),
            pl.BlockSpec((tn, n), lambda i: (i, 0)),
            pl.BlockSpec((3 * v, 3 * K), lambda i: (0, 0)),
            pl.BlockSpec((3 * K, K), lambda i: (0, 0)),
            pl.BlockSpec((K, 3 * mu), lambda i: (0, 0)),
            pl.BlockSpec((n, m), lambda i: (0, 0)),
            pl.BlockSpec((K, m), lambda i: (0, 0)),
            pl.BlockSpec((1, m), lambda i: (0, 0)),
        ],
        out_specs=(pl.BlockSpec((tn, m), lambda i: (i, 0)),
                   pl.BlockSpec((tn, 3 * mu), lambda i: (i, 0))),
        compiler_params=pltpu.CompilerParams(
            dimension_semantics=("parallel",),
            vmem_limit_bytes=64 * 1024 * 1024),
        cost_estimate=cost,
    )(V_flat, s_io, W_kron, S_sum, E_gate, wm_s, wm_norm, bm)

    V_dash = V_dash_flat.reshape(N, mu, 3)           # free reshape back to [N, mu, 3]
    return s_dash, V_dash


def gvp_reference(s, V, W_h, W_mu, W_m, b_m, eps=1e-4):
    """Pure-JAX reference matching the PyTorch forward (vector_gate=False)."""
    V_h = jnp.einsum('hv,nvc->nhc', W_h, V)
    V_mu = jnp.einsum('mh,nhc->nmc', W_mu, V_h)
    s_h = jnp.maximum(jnp.linalg.norm(V_h, axis=-1), eps)
    s_hn = jnp.concatenate([s, s_h], axis=-1)
    s_m = s_hn @ W_m.T + b_m
    s_dash = jax.nn.relu(s_m)
    v_mu = jnp.maximum(jnp.linalg.norm(V_mu, axis=-1, keepdims=True), eps)
    V_dash = jax.nn.sigmoid(v_mu) * V_mu
    return s_dash, V_dash


def _kaiming_uniform(key, shape, fan_in):
    # PyTorch kaiming_uniform_(a=sqrt(5)) -> bound = 1/sqrt(fan_in)
    bound = 1.0 / math.sqrt(fan_in)
    return jax.random.uniform(key, shape, jnp.float32, -bound, bound)


if __name__ == "__main__":
    # Module config: in_dims=(n=32 scalars, v=16 vectors), out_dims=(m=32, mu=16)
    n_scalar, v_vec = 32, 16
    m_scalar, mu_vec = 32, 16
    h = max(v_vec, mu_vec)
    eps = 1e-4

    key = jax.random.PRNGKey(0)
    k_s, k_V, k_wh, k_wmu, k_wm, k_bm = jax.random.split(key, 6)

    # Deterministic synthetic parameters (shapes follow GVP.__init__).
    W_h = _kaiming_uniform(k_wh, (h, v_vec), v_vec)                       # [h, v]
    W_mu = _kaiming_uniform(k_wmu, (mu_vec, h), h)                        # [mu, h]
    W_m = _kaiming_uniform(k_wm, (m_scalar, h + n_scalar), h + n_scalar)  # [m, n+h]
    b_m = _kaiming_uniform(k_bm, (m_scalar,), h + n_scalar)               # [m]

    # Test 1: small batch (single tile, tn clamps to N), f32 I/O.
    N = 16
    s = jax.random.normal(k_s, (N, n_scalar), jnp.float32)
    V = jax.random.normal(k_V, (N, v_vec, 3), jnp.float32)

    s_dash, V_dash = gvp_forward(s, V, W_h, W_mu, W_m, b_m, eps=eps)
    jax.block_until_ready((s_dash, V_dash))
    s_ref, V_ref = gvp_reference(s, V, W_h, W_mu, W_m, b_m, eps=eps)
    assert s_dash.shape == (N, m_scalar) and V_dash.shape == (N, mu_vec, 3)
    assert jnp.allclose(s_dash, s_ref, atol=2e-5, rtol=2e-5)
    assert jnp.allclose(V_dash, V_ref, atol=2e-5, rtol=2e-5)

    # Test 2: non-divisible batch exercising the ragged (masked) last block.
    N2 = 200
    s2 = jax.random.normal(jax.random.fold_in(k_s, 1), (N2, n_scalar), jnp.float32)
    V2 = jax.random.normal(jax.random.fold_in(k_V, 1), (N2, v_vec, 3), jnp.float32)
    s_dash2, V_dash2 = gvp_forward(s2, V2, W_h, W_mu, W_m, b_m, eps=eps, tn=64)
    jax.block_until_ready((s_dash2, V_dash2))
    s_ref2, V_ref2 = gvp_reference(s2, V2, W_h, W_mu, W_m, b_m, eps=eps)
    assert s_dash2.shape == (N2, m_scalar) and V_dash2.shape == (N2, mu_vec, 3)
    assert jnp.allclose(s_dash2, s_ref2, atol=2e-5, rtol=2e-5)
    assert jnp.allclose(V_dash2, V_ref2, atol=2e-5, rtol=2e-5)

    # Test 3: larger batch, default big tile, bf16 I/O (the v6e/v7x bandwidth
    # path), >=2 grid steps, ragged last block. Looser tolerance for bf16.
    N3 = 2000
    s3 = jax.random.normal(jax.random.fold_in(k_s, 2), (N3, n_scalar), jnp.float32)
    V3 = jax.random.normal(jax.random.fold_in(k_V, 2), (N3, v_vec, 3), jnp.float32)
    s_dash3, V_dash3 = gvp_forward(s3, V3, W_h, W_mu, W_m, b_m, eps=eps,
                                   io_dtype=jnp.bfloat16)
    jax.block_until_ready((s_dash3, V_dash3))
    s_ref3, V_ref3 = gvp_reference(s3, V3, W_h, W_mu, W_m, b_m, eps=eps)
    assert s_dash3.shape == (N3, m_scalar) and V_dash3.shape == (N3, mu_vec, 3)
    assert jnp.allclose(s_dash3.astype(jnp.float32), s_ref3, atol=5e-2, rtol=5e-2)
    assert jnp.allclose(V_dash3.astype(jnp.float32), V_ref3, atol=5e-2, rtol=5e-2)

    print("KERNEL_OK")
</pallas_src>

<mosaic_0001>
module attributes {stable_mosaic.version = 11 : i64} {
  func.func @gvp_kernel(%arg0: i32, %arg1: memref<16x48xf32, #tpu.memory_space<vmem>>, %arg2: memref<16x32xf32, #tpu.memory_space<vmem>>, %arg3: memref<48x96xf32, #tpu.memory_space<vmem>>, %arg4: memref<96x32xf32, #tpu.memory_space<vmem>>, %arg5: memref<32x48xf32, #tpu.memory_space<vmem>>, %arg6: memref<32x32xf32, #tpu.memory_space<vmem>>, %arg7: memref<32x32xf32, #tpu.memory_space<vmem>>, %arg8: memref<1x32xf32, #tpu.memory_space<vmem>>, %arg9: memref<16x32xf32, #tpu.memory_space<vmem>>, %arg10: memref<16x48xf32, #tpu.memory_space<vmem>>) attributes {dimension_semantics = [#tpu.dimension_semantics<parallel>], iteration_bounds = array<i64: 1>, scalar_prefetch = 0 : i64, scratch_operands = 0 : i64, tpu.core_type = #tpu.core_type<tc>, window_params = [{transform_indices = @transform_0, window_bounds = array<i64: 16, 48>}, {transform_indices = @transform_1, window_bounds = array<i64: 16, 32>}, {pipeline_mode = #tpu.pipeline_mode<synchronous>, transform_indices = @transform_2, window_bounds = array<i64: 48, 96>}, {pipeline_mode = #tpu.pipeline_mode<synchronous>, transform_indices = @transform_3, window_bounds = array<i64: 96, 32>}, {pipeline_mode = #tpu.pipeline_mode<synchronous>, transform_indices = @transform_4, window_bounds = array<i64: 32, 48>}, {pipeline_mode = #tpu.pipeline_mode<synchronous>, transform_indices = @transform_5, window_bounds = array<i64: 32, 32>}, {pipeline_mode = #tpu.pipeline_mode<synchronous>, transform_indices = @transform_6, window_bounds = array<i64: 32, 32>}, {pipeline_mode = #tpu.pipeline_mode<synchronous>, transform_indices = @transform_7, window_bounds = array<i64: 1, 32>}, {transform_indices = @transform_8, window_bounds = array<i64: 16, 32>}, {transform_indices = @transform_9, window_bounds = array<i64: 16, 48>}]} {
    %c0 = arith.constant 0 : index
    %c0_0 = arith.constant 0 : index
    %0 = vector.load %arg1[%c0, %c0_0] : memref<16x48xf32, #tpu.memory_space<vmem>>, vector<16x48xf32>
    %c0_1 = arith.constant 0 : index
    %c0_2 = arith.constant 0 : index
    %1 = vector.load %arg3[%c0_1, %c0_2] : memref<48x96xf32, #tpu.memory_space<vmem>>, vector<48x96xf32>
    %cst = arith.constant dense<0.000000e+00> : vector<16x96xf32>
    %2 = tpu.matmul %0, %1, %cst {dimension_numbers = #tpu.dot_dimension_numbers<[1], [0], [0], [1], [0, 0, 1, 1], [], []>} : vector<16x48xf32>, vector<48x96xf32>, vector<16x96xf32> -> vector<16x96xf32>
    %3 = arith.mulf %2, %2 : vector<16x96xf32>
    %c0_3 = arith.constant 0 : index
    %c0_4 = arith.constant 0 : index
    %4 = vector.load %arg4[%c0_3, %c0_4] : memref<96x32xf32, #tpu.memory_space<vmem>>, vector<96x32xf32>
    %cst_5 = arith.constant dense<0.000000e+00> : vector<16x32xf32>
    %5 = tpu.matmul %3, %4, %cst_5 {dimension_numbers = #tpu.dot_dimension_numbers<[1], [0], [0], [1], [0, 0, 1, 1], [], []>} : vector<16x96xf32>, vector<96x32xf32>, vector<16x32xf32> -> vector<16x32xf32>
    %6 = math.sqrt %5 : vector<16x32xf32>
    %cst_6 = arith.constant 9.99999974E-5 : f32
    %7 = vector.broadcast %cst_6 : f32 to vector<16x32xf32>
    %8 = arith.maximumf %6, %7 : vector<16x32xf32>
    %c0_7 = arith.constant 0 : index
    %c0_8 = arith.constant 0 : index
    %9 = vector.load %arg2[%c0_7, %c0_8] : memref<16x32xf32, #tpu.memory_space<vmem>>, vector<16x32xf32>
    %c0_9 = arith.constant 0 : index
    %c0_10 = arith.constant 0 : index
    %10 = vector.load %arg6[%c0_9, %c0_10] : memref<32x32xf32, #tpu.memory_space<vmem>>, vector<32x32xf32>
    %cst_11 = arith.constant dense<0.000000e+00> : vector<16x32xf32>
    %11 = tpu.matmul %9, %10, %cst_11 {dimension_numbers = #tpu.dot_dimension_numbers<[1], [0], [0], [1], [0, 0, 1, 1], [], []>} : vector<16x32xf32>, vector<32x32xf32>, vector<16x32xf32> -> vector<16x32xf32>
    %c0_12 = arith.constant 0 : index
    %c0_13 = arith.constant 0 : index
    %12 = vector.load %arg7[%c0_12, %c0_13] : memref<32x32xf32, #tpu.memory_space<vmem>>, vector<32x32xf32>
    %cst_14 = arith.constant dense<0.000000e+00> : vector<16x32xf32>
    %13 = tpu.matmul %8, %12, %cst_14 {dimension_numbers = #tpu.dot_dimension_numbers<[1], [0], [0], [1], [0, 0, 1, 1], [], []>} : vector<16x32xf32>, vector<32x32xf32>, vector<16x32xf32> -> vector<16x32xf32>
    %14 = arith.addf %11, %13 : vector<16x32xf32>
    %c0_15 = arith.constant 0 : index
    %c0_16 = arith.constant 0 : index
    %15 = vector.load %arg8[%c0_15, %c0_16] : memref<1x32xf32, #tpu.memory_space<vmem>>, vector<1x32xf32>
    %16 = vector.broadcast %15 : vector<1x32xf32> to vector<16x32xf32>
    %17 = arith.addf %14, %16 : vector<16x32xf32>
    %cst_17 = arith.constant 0.000000e+00 : f32
    %18 = vector.broadcast %cst_17 : f32 to vector<16x32xf32>
    %19 = arith.maximumf %17, %18 : vector<16x32xf32>
    %c0_18 = arith.constant 0 : index
    %c0_19 = arith.constant 0 : index
    %20 = vector.load %arg9[%c0_18, %c0_19] : memref<16x32xf32, #tpu.memory_space<vmem>>, vector<16x32xf32>
    tpu.vector_store %arg9[%c0_18, %c0_19], %19 {strides = array<i32>} : memref<16x32xf32, #tpu.memory_space<vmem>>, vector<16x32xf32>,
    %21 = arith.negf %8 : vector<16x32xf32>
    %22 = math.exp %21 : vector<16x32xf32>
    %cst_20 = arith.constant 1.000000e+00 : f32
    %23 = vector.broadcast %cst_20 : f32 to vector<16x32xf32>
    %24 = arith.addf %23, %22 : vector<16x32xf32>
    %25 = arith.divf %23, %24 : vector<16x32xf32>
    %c0_21 = arith.constant 0 : index
    %c0_22 = arith.constant 0 : index
    %26 = vector.load %arg5[%c0_21, %c0_22] : memref<32x48xf32, #tpu.memory_space<vmem>>, vector<32x48xf32>
    %cst_23 = arith.constant dense<0.000000e+00> : vector<16x48xf32>
    %27 = tpu.matmul %25, %26, %cst_23 {dimension_numbers = #tpu.dot_dimension_numbers<[1], [0], [0], [1], [0, 0, 1, 1], [], []>} : vector<16x32xf32>, vector<32x48xf32>, vector<16x48xf32> -> vector<16x48xf32>
    %28 = vector.extract_strided_slice %2 {offsets = [0, 0], sizes = [16, 48], strides = [1, 1]} : vector<16x96xf32> to vector<16x48xf32>
    %29 = arith.mulf %27, %28 : vector<16x48xf32>
    %c0_24 = arith.constant 0 : index
    %c0_25 = arith.constant 0 : index
    %30 = vector.load %arg10[%c0_24, %c0_25] : memref<16x48xf32, #tpu.memory_space<vmem>>, vector<16x48xf32>
    tpu.vector_store %arg10[%c0_24, %c0_25], %29 {strides = array<i32>} : memref<16x48xf32, #tpu.memory_space<vmem>>, vector<16x48xf32>,
    return
  }
  func.func @transform_0(%arg0: i32) -> (i32, i32) {
    %c0_i32 = arith.constant 0 : i32
    %c0_i32_0 = arith.constant 0 : i32
    return %arg0, %c0_i32 : i32, i32
  }
  func.func @transform_1(%arg0: i32) -> (i32, i32) {
    %c0_i32 = arith.constant 0 : i32
    %c0_i32_0 = arith.constant 0 : i32
    return %arg0, %c0_i32 : i32, i32
  }
  func.func @transform_2(%arg0: i32) -> (i32, i32) {
    %c0_i32 = arith.constant 0 : i32
    %c0_i32_0 = arith.constant 0 : i32
    %c0_i32_1 = arith.constant 0 : i32
    return %c0_i32, %c0_i32_0 : i32, i32
  }
  func.func @transform_3(%arg0: i32) -> (i32, i32) {
    %c0_i32 = arith.constant 0 : i32
    %c0_i32_0 = arith.constant 0 : i32
    %c0_i32_1 = arith.constant 0 : i32
    return %c0_i32, %c0_i32_0 : i32, i32
  }
  func.func @transform_4(%arg0: i32) -> (i32, i32) {
    %c0_i32 = arith.constant 0 : i32
    %c0_i32_0 = arith.constant 0 : i32
    %c0_i32_1 = arith.constant 0 : i32
    return %c0_i32, %c0_i32_0 : i32, i32
  }
  func.func @transform_5(%arg0: i32) -> (i32, i32) {
    %c0_i32 = arith.constant 0 : i32
    %c0_i32_0 = arith.constant 0 : i32
    %c0_i32_1 = arith.constant 0 : i32
    return %c0_i32, %c0_i32_0 : i32, i32
  }
  func.func @transform_6(%arg0: i32) -> (i32, i32) {
    %c0_i32 = arith.constant 0 : i32
    %c0_i32_0 = arith.constant 0 : i32
    %c0_i32_1 = arith.constant 0 : i32
    return %c0_i32, %c0_i32_0 : i32, i32
  }
  func.func @transform_7(%arg0: i32) -> (i32, i32) {
    %c0_i32 = arith.constant 0 : i32
    %c0_i32_0 = arith.constant 0 : i32
    %c0_i32_1 = arith.constant 0 : i32
    return %c0_i32, %c0_i32_0 : i32, i32
  }
  func.func @transform_8(%arg0: i32) -> (i32, i32) {
    %c0_i32 = arith.constant 0 : i32
    %c0_i32_0 = arith.constant 0 : i32
    return %arg0, %c0_i32 : i32, i32
  }
  func.func @transform_9(%arg0: i32) -> (i32, i32) {
    %c0_i32 = arith.constant 0 : i32
    %c0_i32_0 = arith.constant 0 : i32
    return %arg0, %c0_i32 : i32, i32
  }
}

</mosaic_0001>

<llo_original>
// kernel: tpu_custom_call.1
$region0: #{tpu_custom_call.1}
  #allocation0 [shape = 'u32[]', space=smem, size = 0x4, offset = 0x4, fixed_abs, tag = 'smem constant byte address 0x4 - core index']
  #allocation1 [shape = 'u32[144,128]{1,0:T(1,128)}', space=vmem, size = 0x12000, scoped, tag = 'internal scratch']
  %s0 = inlined_call_operand.hbm [shape: f32[16,48], index: 0, kind: input, shape index: {}]
  %s1 = inlined_call_operand.hbm [shape: f32[16,32], index: 1, kind: input, shape index: {}]
  %s2 = inlined_call_operand.hbm [shape: f32[48,96], index: 2, kind: input, shape index: {}]
  %s3 = inlined_call_operand.hbm [shape: f32[96,32], index: 3, kind: input, shape index: {}]
  %s4 = inlined_call_operand.hbm [shape: f32[32,48], index: 4, kind: input, shape index: {}]
  %s5 = inlined_call_operand.hbm [shape: f32[32,32], index: 5, kind: input, shape index: {}]
  %s6 = inlined_call_operand.hbm [shape: f32[32,32], index: 6, kind: input, shape index: {}]
  %s7 = inlined_call_operand.hbm [shape: f32[1,32], index: 7, kind: input, shape index: {}]
  %s8 = inlined_call_operand.hbm [shape: f32[16,32], index: 8, kind: output, shape index: {0}]
  %s9 = inlined_call_operand.hbm [shape: f32[16,48], index: 9, kind: output, shape index: {1}]
  %10 = xla_tuple %s8, %s9
  %s11 = sld [smem:[#allocation0]]
  $region82: #{tpu_custom_call.1} parent=0
    _
  %s13 = ssub.s32 1, %s11
  %s14 = scalar_select 0, %s13, %s11
  $region1: #{tpu_custom_call.1} parent=0
    #allocation2 [shape = 'u8[8192]{0}', space=vmem, size = 0x2000, scoped, tag = 'input window, operand 0, single buffered']
    #allocation3 [shape = 's32[1]{0}', space=sflag, size = 0x4, scoped, tag = 'scoped memory for tpu_custom_call.1']
    #allocation4 [shape = 's32[1]{0}', space=sflag, size = 0x4, scoped, tag = 'scoped memory for tpu_custom_call.1']
    #allocation5 [shape = 'u8[8192]{0}', space=vmem, size = 0x2000, scoped, tag = 'input window, operand 1, single buffered']
    #allocation6 [shape = 's32[1]{0}', space=sflag, size = 0x4, scoped, tag = 'scoped memory for tpu_custom_call.1']
    #allocation7 [shape = 'u8[24576]{0}', space=vmem, size = 0x6000, scoped, tag = 'input window, operand 2, single buffered']
    #allocation8 [shape = 'u8[49152]{0}', space=vmem, size = 0xc000, scoped, tag = 'input window, operand 3, single buffered']
    #allocation9 [shape = 's32[1]{0}', space=sflag, size = 0x4, scoped, tag = 'scoped memory for tpu_custom_call.1']
    #allocation10 [shape = 'u8[16384]{0}', space=vmem, size = 0x4000, scoped, tag = 'input window, operand 4, single buffered']
    #allocation11 [shape = 'u8[16384]{0}', space=vmem, size = 0x4000, scoped, tag = 'input window, operand 5, single buffered']
    #allocation12 [shape = 's32[1]{0}', space=sflag, size = 0x4, scoped, tag = 'scoped memory for tpu_custom_call.1']
    #allocation13 [shape = 'u8[16384]{0}', space=vmem, size = 0x4000, scoped, tag = 'input window, operand 6, single buffered']
    #allocation14 [shape = 'u8[512]{0}', space=vmem, size = 0x400, scoped, tag = 'input window, operand 7, single buffered']
    #allocation15 [shape = 's32[1]{0}', space=sflag, size = 0x4, scoped, tag = 'scoped memory for tpu_custom_call.1']
    #allocation16 [shape = 'u8[8192]{0}', space=vmem, size = 0x2000, scoped, tag = 'output window, operand 0, single buffered']
    #allocation17 [shape = 'u8[8192]{0}', space=vmem, size = 0x2000, scoped, tag = 'output window, operand 1, single buffered']
    #allocation18 [shape = 's32[1]{0}', space=sflag, size = 0x4, scoped, tag = 'scoped memory for tpu_custom_call.1']
    %15 = vsyncpa [#allocation3], 0
    %16 = vsyncpa [#allocation6], 0
    %17 = vsyncpa [#allocation9], 0
    %18 = vsyncpa [#allocation12], 0
    %19 = vsyncpa [#allocation15], 0
    %20 = vsyncpa [#allocation4], 0
    %21 = vsyncpa [#allocation18], 0
    // Predicated region
    $region2: #{tpu_custom_call.1} parent=1 // pred_check
      _
    $region3: #{tpu_custom_call.1} parent=1 // pred_check_branch
      %23 = sbr.rel (0) target = $region5
    $region4: #{tpu_custom_call.1} parent=1 // pred_region
      %s25 = ssub.s32 256, 256
      %26 = vsyncadd [#allocation3], %s25
      %s27 = sshll.u32 [#allocation2], 4
      %s28 = int_to_ptr.vmem [resolvable:$true] %s27
      %33 = dma.hbm_to_vmem [thread:$0]  %s0, 256, %s28, [#allocation3], 128, 128, 8
    $region5: #{tpu_custom_call.1} parent=1 // pred_fallthru
      _
    // Predicated region
    $region6: #{tpu_custom_call.1} parent=1 // pred_check
      _
    $region7: #{tpu_custom_call.1} parent=1 // pred_check_branch
      %35 = sbr.rel (0) target = $region9
    $region8: #{tpu_custom_call.1} parent=1 // pred_region
      %s37 = ssub.s32 256, 256
      %38 = vsyncadd [#allocation6], %s37
      %s39 = sshll.u32 [#allocation5], 4
      %s40 = int_to_ptr.vmem [resolvable:$true] %s39
      %45 = dma.hbm_to_vmem [thread:$0]  %s1, 256, %s40, [#allocation6], 128, 128, 8
    $region9: #{tpu_custom_call.1} parent=1 // pred_fallthru
      _
    // Predicated region
    $region10: #{tpu_custom_call.1} parent=1 // pred_check
      _
    $region11: #{tpu_custom_call.1} parent=1 // pred_check_branch
      %47 = sbr.rel (0) target = $region13
    $region12: #{tpu_custom_call.1} parent=1 // pred_region
      %s49 = ssub.s32 768, 768
      %50 = vsyncadd [#allocation6], %s49
      %s51 = sshll.u32 [#allocation7], 4
      %s52 = int_to_ptr.vmem [resolvable:$true] %s51
      %57 = dma.hbm_to_vmem [thread:$0]  %s2, 768, %s52, [#allocation6], 128, 128, 8
    $region13: #{tpu_custom_call.1} parent=1 // pred_fallthru
      _
    // Predicated region
    $region14: #{tpu_custom_call.1} parent=1 // pred_check
      _
    $region15: #{tpu_custom_call.1} parent=1 // pred_check_branch
      %59 = sbr.rel (0) target = $region17
    $region16: #{tpu_custom_call.1} parent=1 // pred_region
      %s61 = ssub.s32 1536, 1536
      %62 = vsyncadd [#allocation9], %s61
      %s63 = sshll.u32 [#allocation8], 4
      %s64 = int_to_ptr.vmem [resolvable:$true] %s63
      %69 = dma.hbm_to_vmem [thread:$0]  %s3, 1536, %s64, [#allocation9], 128, 128, 8
    $region17: #{tpu_custom_call.1} parent=1 // pred_fallthru
      _
    // Predicated region
    $region18: #{tpu_custom_call.1} parent=1 // pred_check
      _
    $region19: #{tpu_custom_call.1} parent=1 // pred_check_branch
      %71 = sbr.rel (0) target = $region21
    $region20: #{tpu_custom_call.1} parent=1 // pred_region
      %s73 = ssub.s32 512, 512
      %74 = vsyncadd [#allocation9], %s73
      %s75 = sshll.u32 [#allocation10], 4
      %s76 = int_to_ptr.vmem [resolvable:$true] %s75
      %81 = dma.hbm_to_vmem [thread:$0]  %s4, 512, %s76, [#allocation9], 128, 128, 8
    $region21: #{tpu_custom_call.1} parent=1 // pred_fallthru
      _
    // Predicated region
    $region22: #{tpu_custom_call.1} parent=1 // pred_check
      _
    $region23: #{tpu_custom_call.1} parent=1 // pred_check_branch
      %83 = sbr.rel (0) target = $region25
    $region24: #{tpu_custom_call.1} parent=1 // pred_region
      %s85 = ssub.s32 512, 512
      %86 = vsyncadd [#allocation12], %s85
      %s87 = sshll.u32 [#allocation11], 4
      %s88 = int_to_ptr.vmem [resolvable:$true] %s87
      %93 = dma.hbm_to_vmem [thread:$0]  %s5, 512, %s88, [#allocation12], 128, 128, 8
    $region25: #{tpu_custom_call.1} parent=1 // pred_fallthru
      _
    // Predicated region
    $region26: #{tpu_custom_call.1} parent=1 // pred_check
      _
    $region27: #{tpu_custom_call.1} parent=1 // pred_check_branch
      %95 = sbr.rel (0) target = $region29
    $region28: #{tpu_custom_call.1} parent=1 // pred_region
      %s97 = ssub.s32 512, 512
      %98 = vsyncadd [#allocation12], %s97
      %s99 = sshll.u32 [#allocation13], 4
      %s100 = int_to_ptr.vmem [resolvable:$true] %s99
      %105 = dma.hbm_to_vmem [thread:$0]  %s6, 512, %s100, [#allocation12], 128, 128, 8
    $region29: #{tpu_custom_call.1} parent=1 // pred_fallthru
      _
    // Predicated region
    $region30: #{tpu_custom_call.1} parent=1 // pred_check
      _
    $region31: #{tpu_custom_call.1} parent=1 // pred_check_branch
      %107 = sbr.rel (0) target = $region33
    $region32: #{tpu_custom_call.1} parent=1 // pred_region
      %s109 = ssub.s32 16, 16
      %110 = vsyncadd [#allocation15], %s109
      %s112 = sshll.u32 [#allocation14], 4
      %s113 = int_to_ptr.vmem [resolvable:$true] %s112
      %115 = dma.hbm_to_vmem [thread:$0]  %s7, 16, %s113, [#allocation15]
    $region33: #{tpu_custom_call.1} parent=1 // pred_fallthru
      _
    // Predicated region
    $region34: #{tpu_custom_call.1} parent=1 // pred_check
      _
    $region35: #{tpu_custom_call.1} parent=1 // pred_check_branch
      %117 = sbr.rel (0) target = $region37
    $region36: #{tpu_custom_call.1} parent=1 // pred_region
      %118 = dma.done [#allocation3], 256
    $region37: #{tpu_custom_call.1} parent=1 // pred_fallthru
      _
    // Predicated region
    $region38: #{tpu_custom_call.1} parent=1 // pred_check
      _
    $region39: #{tpu_custom_call.1} parent=1 // pred_check_branch
      %120 = sbr.rel (0) target = $region41
    $region40: #{tpu_custom_call.1} parent=1 // pred_region
      %121 = dma.done [#allocation6], 256
    $region41: #{tpu_custom_call.1} parent=1 // pred_fallthru
      _
    // Predicated region
    $region42: #{tpu_custom_call.1} parent=1 // pred_check
      _
    $region43: #{tpu_custom_call.1} parent=1 // pred_check_branch
      %123 = sbr.rel (0) target = $region45
    $region44: #{tpu_custom_call.1} parent=1 // pred_region
      %124 = dma.done [#allocation6], 768
    $region45: #{tpu_custom_call.1} parent=1 // pred_fallthru
      _
    // Predicated region
    $region46: #{tpu_custom_call.1} parent=1 // pred_check
      _
    $region47: #{tpu_custom_call.1} parent=1 // pred_check_branch
      %126 = sbr.rel (0) target = $region49
    $region48: #{tpu_custom_call.1} parent=1 // pred_region
      %127 = dma.done [#allocation9], 1536
    $region49: #{tpu_custom_call.1} parent=1 // pred_fallthru
      _
    // Predicated region
    $region50: #{tpu_custom_call.1} parent=1 // pred_check
      _
    $region51: #{tpu_custom_call.1} parent=1 // pred_check_branch
      %129 = sbr.rel (0) target = $region53
    $region52: #{tpu_custom_call.1} parent=1 // pred_region
      %130 = dma.done [#allocation9], 512
    $region53: #{tpu_custom_call.1} parent=1 // pred_fallthru
      _
    // Predicated region
    $region54: #{tpu_custom_call.1} parent=1 // pred_check
      _
    $region55: #{tpu_custom_call.1} parent=1 // pred_check_branch
      %132 = sbr.rel (0) target = $region57
    $region56: #{tpu_custom_call.1} parent=1 // pred_region
      %133 = dma.done [#allocation12], 512
    $region57: #{tpu_custom_call.1} parent=1 // pred_fallthru
      _
    // Predicated region
    $region58: #{tpu_custom_call.1} parent=1 // pred_check
      _
    $region59: #{tpu_custom_call.1} parent=1 // pred_check_branch
      %135 = sbr.rel (0) target = $region61
    $region60: #{tpu_custom_call.1} parent=1 // pred_region
      %136 = dma.done [#allocation12], 512
    $region61: #{tpu_custom_call.1} parent=1 // pred_fallthru
      _
    // Predicated region
    $region62: #{tpu_custom_call.1} parent=1 // pred_check
      _
    $region63: #{tpu_custom_call.1} parent=1 // pred_check_branch
      %138 = sbr.rel (0) target = $region65
    $region64: #{tpu_custom_call.1} parent=1 // pred_region
      %139 = dma.done [#allocation15], 16
    $region65: #{tpu_custom_call.1} parent=1 // pred_fallthru
      _
    %v140 = vld [vmem:[#allocation2] sm:$0xff]
    %v141 = vld [vmem:[#allocation2 + $0x8] sm:$0xff]
    %v142 = vld [vmem:[#allocation7] sm:$0xff]
    %v143 = vld [vmem:[#allocation7 + $0x8] sm:$0xff]
    %v144 = vld [vmem:[#allocation7 + $0x10] sm:$0xff]
    %v145 = vld [vmem:[#allocation7 + $0x18] sm:$0xff]
    %v146 = vld [vmem:[#allocation7 + $0x20] sm:$0xff]
    %v147 = vld [vmem:[#allocation7 + $0x28] sm:$0xff]
    %vm148 = vcmask 392192
    %v150 = vsel %vm148, %v140, 0
    %v153 = vsel %vm148, %v141, 0
    %155 = vmatprep.subr.mxu0 0.0
    %156 = vmatpush1.msra.mxu0 %v142
    %157 = vmatprep.subr.mxu0 0.0
    %158 = vmatpush1.msra.mxu0 %v143
    %159 = vmatprep.subr.mxu0 0.0
    %160 = vmatpush1.msra.mxu0 %v144
    %161 = vmatprep.subr.mxu0 0.0
    %162 = vmatpush1.msra.mxu0 %v145
    %163 = vmatprep.subr.mxu0 0.0
    %164 = vmatpush1.msra.mxu0 %v146
    %165 = vmatprep.subr.mxu0 0.0
    %166 = vmatpush1.msra.mxu0 %v147
    %167 = vmatprep.subr.mxu0 0.0
    %168 = vmatpush1.msra.mxu0 0.0
    %169 = vmatprep.subr.mxu0 0.0
    %170 = vmatpush1.msra.mxu0 0.0
    %171 = vmatprep.subr.mxu0 0.0
    %172 = vmatpush1.msra.mxu0 0.0
    %173 = vmatprep.subr.mxu0 0.0
    %174 = vmatpush1.msra.mxu0 0.0
    %175 = vmatprep.subr.mxu0 0.0
    %176 = vmatpush1.msra.mxu0 0.0
    %177 = vmatprep.subr.mxu0 0.0
    %178 = vmatpush1.msra.mxu0 0.0
    %179 = vmatprep.subr.mxu0 0.0
    %180 = vmatpush1.msra.mxu0 0.0
    %181 = vmatprep.subr.mxu0 0.0
    %182 = vmatpush1.msra.mxu0 0.0
    %183 = vmatprep.subr.mxu0 0.0
    %184 = vmatpush1.msra.mxu0 0.0
    %185 = vmatprep.subr.mxu0 0.0
    %186 = vmatpush1.msra.mxu0 0.0
    %187 = vmatprep.subr.mxu0 0.0
    %188 = vmatpush1.msra.mxu0 0.0
    %189 = vmatprep.subr.mxu0 0.0
    %190 = vmatpush1.msra.mxu0 0.0
    %191 = vmatprep.subr.mxu0 0.0
    %192 = vmatpush1.msra.mxu0 0.0
    %193 = vmatprep.subr.mxu0 0.0
    %194 = vmatpush1.msra.mxu0 0.0
    %195 = vmatprep.subr.mxu0 0.0
    %196 = vmatpush1.msra.mxu0 0.0
    %197 = vmatprep.subr.mxu0 0.0
    %198 = vmatpush1.msra.mxu0 0.0
    %199 = vmatprep.subr.mxu0 0.0
    %200 = vmatpush1.msra.mxu0 0.0
    %201 = vmatprep.subr.mxu0 0.0
    %202 = vmatpush1.msra.mxu0 0.0
    %203 = vmatprep.subr.mxu0 0.0
    %204 = vmatpush1.msra.mxu0 0.0
    %205 = vmatprep.subr.mxu0 0.0
    %206 = vmatpush1.msra.mxu0 0.0
    %207 = vmatprep.subr.mxu0 0.0
    %208 = vmatpush1.msra.mxu0 0.0
    %209 = vmatprep.subr.mxu0 0.0
    %210 = vmatpush1.msra.mxu0 0.0
    %211 = vmatprep.subr.mxu0 0.0
    %212 = vmatpush1.msra.mxu0 0.0
    %213 = vmatprep.subr.mxu0 0.0
    %214 = vmatpush1.msra.mxu0 0.0
    %215 = vmatprep.subr.mxu0 0.0
    %216 = vmatpush1.msra.mxu0 0.0
    %217 = vmatprep.subr.mxu0 0.0
    %218 = vmatpush1.msra.mxu0 0.0
    %219 = vmatprep.mubr.f32.mxu0 0.0
    %220 = vmatmul.mubr.f32.gmra.mrb[0].mxu0 %v150
    %v221 = vpop.f32.mrb[0].mxu0
    %v222 = vadd.f32 0.0, %v221
    %v223 = vpop.f32.mrb[0].mxu0
    %224 = vmatprep.mubr.f32.mxu0 0.0
    %225 = vmatmul.mubr.f32.gmra.mrb[0].mxu0 %v153
    %v226 = vpop.f32.mrb[0].mxu0
    %v227 = vadd.f32 0.0, %v226
    %v228 = vpop.f32.mrb[0].mxu0
    %229 = vdwg.mxu0
    %v230 = vmul.f32 %v222, %v222
    %v231 = vmul.f32 %v227, %v227
    %v232 = vld [vmem:[#allocation8] sm:$0xff]
    %v233 = vld [vmem:[#allocation8 + $0x8] sm:$0xff]
    %v234 = vld [vmem:[#allocation8 + $0x10] sm:$0xff]
    %v235 = vld [vmem:[#allocation8 + $0x18] sm:$0xff]
    %v236 = vld [vmem:[#allocation8 + $0x20] sm:$0xff]
    %v237 = vld [vmem:[#allocation8 + $0x28] sm:$0xff]
    %v238 = vld [vmem:[#allocation8 + $0x30] sm:$0xff]
    %v239 = vld [vmem:[#allocation8 + $0x38] sm:$0xff]
    %v240 = vld [vmem:[#allocation8 + $0x40] sm:$0xff]
    %v241 = vld [vmem:[#allocation8 + $0x48] sm:$0xff]
    %v242 = vld [vmem:[#allocation8 + $0x50] sm:$0xff]
    %v243 = vld [vmem:[#allocation8 + $0x58] sm:$0xff]
    %vm244 = vcmask 785408
    %v246 = vsel %vm244, %v230, 0
    %v249 = vsel %vm244, %v231, 0
    %251 = vmatprep.subr.mxu0 0.0
    %252 = vmatpush1.msra.mxu0 %v232
    %253 = vmatprep.subr.mxu0 0.0
    %254 = vmatpush1.msra.mxu0 %v233
    %255 = vmatprep.subr.mxu0 0.0
    %256 = vmatpush1.msra.mxu0 %v234
    %257 = vmatprep.subr.mxu0 0.0
    %258 = vmatpush1.msra.mxu0 %v235
    %259 = vmatprep.subr.mxu0 0.0
    %260 = vmatpush1.msra.mxu0 %v236
    %261 = vmatprep.subr.mxu0 0.0
    %262 = vmatpush1.msra.mxu0 %v237
    %263 = vmatprep.subr.mxu0 0.0
    %264 = vmatpush1.msra.mxu0 %v238
    %265 = vmatprep.subr.mxu0 0.0
    %266 = vmatpush1.msra.mxu0 %v239
    %267 = vmatprep.subr.mxu0 0.0
    %268 = vmatpush1.msra.mxu0 %v240
    %269 = vmatprep.subr.mxu0 0.0
    %270 = vmatpush1.msra.mxu0 %v241
    %271 = vmatprep.subr.mxu0 0.0
    %272 = vmatpush1.msra.mxu0 %v242
    %273 = vmatprep.subr.mxu0 0.0
    %274 = vmatpush1.msra.mxu0 %v243
    %275 = vmatprep.subr.mxu0 0.0
    %276 = vmatpush1.msra.mxu0 0.0
    %277 = vmatprep.subr.mxu0 0.0
    %278 = vmatpush1.msra.mxu0 0.0
    %279 = vmatprep.subr.mxu0 0.0
    %280 = vmatpush1.msra.mxu0 0.0
    %281 = vmatprep.subr.mxu0 0.0
    %282 = vmatpush1.msra.mxu0 0.0
    %283 = vmatprep.subr.mxu0 0.0
    %284 = vmatpush1.msra.mxu0 0.0
    %285 = vmatprep.subr.mxu0 0.0
    %286 = vmatpush1.msra.mxu0 0.0
    %287 = vmatprep.subr.mxu0 0.0
    %288 = vmatpush1.msra.mxu0 0.0
    %289 = vmatprep.subr.mxu0 0.0
    %290 = vmatpush1.msra.mxu0 0.0
    %291 = vmatprep.subr.mxu0 0.0
    %292 = vmatpush1.msra.mxu0 0.0
    %293 = vmatprep.subr.mxu0 0.0
    %294 = vmatpush1.msra.mxu0 0.0
    %295 = vmatprep.subr.mxu0 0.0
    %296 = vmatpush1.msra.mxu0 0.0
    %297 = vmatprep.subr.mxu0 0.0
    %298 = vmatpush1.msra.mxu0 0.0
    %299 = vmatprep.subr.mxu0 0.0
    %300 = vmatpush1.msra.mxu0 0.0
    %301 = vmatprep.subr.mxu0 0.0
    %302 = vmatpush1.msra.mxu0 0.0
    %303 = vmatprep.subr.mxu0 0.0
    %304 = vmatpush1.msra.mxu0 0.0
    %305 = vmatprep.subr.mxu0 0.0
    %306 = vmatpush1.msra.mxu0 0.0
    %307 = vmatprep.subr.mxu0 0.0
    %308 = vmatpush1.msra.mxu0 0.0
    %309 = vmatprep.subr.mxu0 0.0
    %310 = vmatpush1.msra.mxu0 0.0
    %311 = vmatprep.subr.mxu0 0.0
    %312 = vmatpush1.msra.mxu0 0.0
    %313 = vmatprep.subr.mxu0 0.0
    %314 = vmatpush1.msra.mxu0 0.0
    %315 = vmatprep.mubr.f32.mxu0 0.0
    %316 = vmatmul.mubr.f32.gmra.mrb[0].mxu0 %v246
    %v317 = vpop.f32.mrb[0].mxu0
    %v318 = vadd.f32 0.0, %v317
    %v319 = vpop.f32.mrb[0].mxu0
    %320 = vmatprep.mubr.f32.mxu0 0.0
    %321 = vmatmul.mubr.f32.gmra.mrb[0].mxu0 %v249
    %v322 = vpop.f32.mrb[0].mxu0
    %v323 = vadd.f32 0.0, %v322
    %v324 = vpop.f32.mrb[0].mxu0
    %325 = vdwg.mxu0
    %v326 = vrsqrt.pop %v318
    %v327 = vmul.f32 %v318, %v326
    %vm328 = vcmp.eq.f32.partialorder %v318, inf
    %v329 = vsel %vm328, %v318, %v327
    %vm330 = vcmp.eq.f32.partialorder %v318, 0.0
    %v331 = vand.u32 %v318, 2147483648
    %v332 = vsel %vm330, %v331, %v329
    %v333 = vrsqrt.pop %v323
    %v334 = vmul.f32 %v323, %v333
    %vm335 = vcmp.eq.f32.partialorder %v323, inf
    %v336 = vsel %vm335, %v323, %v334
    %vm337 = vcmp.eq.f32.partialorder %v323, 0.0
    %v338 = vand.u32 %v323, 2147483648
    %v339 = vsel %vm337, %v338, %v336
    %v340 = vmax.f32 %v332, 0.0001
    %v341 = vmax.f32 %v339, 0.0001
    %v342 = vld [vmem:[#allocation5] sm:$0xff]
    %v343 = vld [vmem:[#allocation5 + $0x8] sm:$0xff]
    %v344 = vld [vmem:[#allocation11] sm:$0xff]
    %v345 = vld [vmem:[#allocation11 + $0x8] sm:$0xff]
    %v346 = vld [vmem:[#allocation11 + $0x10] sm:$0xff]
    %v347 = vld [vmem:[#allocation11 + $0x18] sm:$0xff]
    %v348 = vld [vmem:[#allocation13] sm:$0xff]
    %v349 = vld [vmem:[#allocation13 + $0x8] sm:$0xff]
    %v350 = vld [vmem:[#allocation13 + $0x10] sm:$0xff]
    %v351 = vld [vmem:[#allocation13 + $0x18] sm:$0xff]
    %vm352 = vcmask 261120
    %v354 = vsel %vm352, %v340, 0
    %v357 = vsel %vm352, %v341, 0
    %359 = vmatprep.subr.mxu0 0.0
    %360 = vmatpush1.msra.mxu0 %v348
    %361 = vmatprep.subr.mxu0 0.0
    %362 = vmatpush1.msra.mxu0 %v349
    %363 = vmatprep.subr.mxu0 0.0
    %364 = vmatpush1.msra.mxu0 %v350
    %365 = vmatprep.subr.mxu0 0.0
    %366 = vmatpush1.msra.mxu0 %v351
    %367 = vmatprep.subr.mxu0 0.0
    %368 = vmatpush1.msra.mxu0 0.0
    %369 = vmatprep.subr.mxu0 0.0
    %370 = vmatpush1.msra.mxu0 0.0
    %371 = vmatprep.subr.mxu0 0.0
    %372 = vmatpush1.msra.mxu0 0.0
    %373 = vmatprep.subr.mxu0 0.0
    %374 = vmatpush1.msra.mxu0 0.0
    %375 = vmatprep.subr.mxu0 0.0
    %376 = vmatpush1.msra.mxu0 0.0
    %377 = vmatprep.subr.mxu0 0.0
    %378 = vmatpush1.msra.mxu0 0.0
    %379 = vmatprep.subr.mxu0 0.0
    %380 = vmatpush1.msra.mxu0 0.0
    %381 = vmatprep.subr.mxu0 0.0
    %382 = vmatpush1.msra.mxu0 0.0
    %383 = vmatprep.subr.mxu0 0.0
    %384 = vmatpush1.msra.mxu0 0.0
    %385 = vmatprep.subr.mxu0 0.0
    %386 = vmatpush1.msra.mxu0 0.0
    %387 = vmatprep.subr.mxu0 0.0
    %388 = vmatpush1.msra.mxu0 0.0
    %389 = vmatprep.subr.mxu0 0.0
    %390 = vmatpush1.msra.mxu0 0.0
    %391 = vmatprep.subr.mxu0 0.0
    %392 = vmatpush1.msra.mxu0 0.0
    %393 = vmatprep.subr.mxu0 0.0
    %394 = vmatpush1.msra.mxu0 0.0
    %395 = vmatprep.subr.mxu0 0.0
    %396 = vmatpush1.msra.mxu0 0.0
    %397 = vmatprep.subr.mxu0 0.0
    %398 = vmatpush1.msra.mxu0 0.0
    %399 = vmatprep.subr.mxu0 0.0
    %400 = vmatpush1.msra.mxu0 0.0
    %401 = vmatprep.subr.mxu0 0.0
    %402 = vmatpush1.msra.mxu0 0.0
    %403 = vmatprep.subr.mxu0 0.0
    %404 = vmatpush1.msra.mxu0 0.0
    %405 = vmatprep.subr.mxu0 0.0
    %406 = vmatpush1.msra.mxu0 0.0
    %407 = vmatprep.subr.mxu0 0.0
    %408 = vmatpush1.msra.mxu0 0.0
    %409 = vmatprep.subr.mxu0 0.0
    %410 = vmatpush1.msra.mxu0 0.0
    %411 = vmatprep.subr.mxu0 0.0
    %412 = vmatpush1.msra.mxu0 0.0
    %413 = vmatprep.subr.mxu0 0.0
    %414 = vmatpush1.msra.mxu0 0.0
    %415 = vmatprep.subr.mxu0 0.0
    %416 = vmatpush1.msra.mxu0 0.0
    %417 = vmatprep.subr.mxu0 0.0
    %418 = vmatpush1.msra.mxu0 0.0
    %419 = vmatprep.subr.mxu0 0.0
    %420 = vmatpush1.msra.mxu0 0.0
    %421 = vmatprep.subr.mxu0 0.0
    %422 = vmatpush1.msra.mxu0 0.0
    %423 = vmatprep.mubr.f32.mxu0 0.0
    %424 = vmatmul.mubr.f32.gmra.mrb[0].mxu0 %v354
    %v425 = vpop.f32.mrb[0].mxu0
    %v426 = vadd.f32 0.0, %v425
    %v427 = vpop.f32.mrb[0].mxu0
    %428 = vmatprep.mubr.f32.mxu0 0.0
    %429 = vmatmul.mubr.f32.gmra.mrb[0].mxu0 %v357
    %v430 = vpop.f32.mrb[0].mxu0
    %v431 = vadd.f32 0.0, %v430
    %v432 = vpop.f32.mrb[0].mxu0
    %433 = vdwg.mxu0
    %v435 = vsel %vm352, %v342, 0
    %v438 = vsel %vm352, %v343, 0
    %440 = vmatprep.subr.mxu0 0.0
    %441 = vmatpush1.msra.mxu0 %v344
    %442 = vmatprep.subr.mxu0 0.0
    %443 = vmatpush1.msra.mxu0 %v345
    %444 = vmatprep.subr.mxu0 0.0
    %445 = vmatpush1.msra.mxu0 %v346
    %446 = vmatprep.subr.mxu0 0.0
    %447 = vmatpush1.msra.mxu0 %v347
    %448 = vmatprep.subr.mxu0 0.0
    %449 = vmatpush1.msra.mxu0 0.0
    %450 = vmatprep.subr.mxu0 0.0
    %451 = vmatpush1.msra.mxu0 0.0
    %452 = vmatprep.subr.mxu0 0.0
    %453 = vmatpush1.msra.mxu0 0.0
    %454 = vmatprep.subr.mxu0 0.0
    %455 = vmatpush1.msra.mxu0 0.0
    %456 = vmatprep.subr.mxu0 0.0
    %457 = vmatpush1.msra.mxu0 0.0
    %458 = vmatprep.subr.mxu0 0.0
    %459 = vmatpush1.msra.mxu0 0.0
    %460 = vmatprep.subr.mxu0 0.0
    %461 = vmatpush1.msra.mxu0 0.0
    %462 = vmatprep.subr.mxu0 0.0
    %463 = vmatpush1.msra.mxu0 0.0
    %464 = vmatprep.subr.mxu0 0.0
    %465 = vmatpush1.msra.mxu0 0.0
    %466 = vmatprep.subr.mxu0 0.0
    %467 = vmatpush1.msra.mxu0 0.0
    %468 = vmatprep.subr.mxu0 0.0
    %469 = vmatpush1.msra.mxu0 0.0
    %470 = vmatprep.subr.mxu0 0.0
    %471 = vmatpush1.msra.mxu0 0.0
    %472 = vmatprep.subr.mxu0 0.0
    %473 = vmatpush1.msra.mxu0 0.0
    %474 = vmatprep.subr.mxu0 0.0
    %475 = vmatpush1.msra.mxu0 0.0
    %476 = vmatprep.subr.mxu0 0.0
    %477 = vmatpush1.msra.mxu0 0.0
    %478 = vmatprep.subr.mxu0 0.0
    %479 = vmatpush1.msra.mxu0 0.0
    %480 = vmatprep.subr.mxu0 0.0
    %481 = vmatpush1.msra.mxu0 0.0
    %482 = vmatprep.subr.mxu0 0.0
    %483 = vmatpush1.msra.mxu0 0.0
    %484 = vmatprep.subr.mxu0 0.0
    %485 = vmatpush1.msra.mxu0 0.0
    %486 = vmatprep.subr.mxu0 0.0
    %487 = vmatpush1.msra.mxu0 0.0
    %488 = vmatprep.subr.mxu0 0.0
    %489 = vmatpush1.msra.mxu0 0.0
    %490 = vmatprep.subr.mxu0 0.0
    %491 = vmatpush1.msra.mxu0 0.0
    %492 = vmatprep.subr.mxu0 0.0
    %493 = vmatpush1.msra.mxu0 0.0
    %494 = vmatprep.subr.mxu0 0.0
    %495 = vmatpush1.msra.mxu0 0.0
    %496 = vmatprep.subr.mxu0 0.0
    %497 = vmatpush1.msra.mxu0 0.0
    %498 = vmatprep.subr.mxu0 0.0
    %499 = vmatpush1.msra.mxu0 0.0
    %500 = vmatprep.subr.mxu0 0.0
    %501 = vmatpush1.msra.mxu0 0.0
    %502 = vmatprep.subr.mxu0 0.0
    %503 = vmatpush1.msra.mxu0 0.0
    %504 = vmatprep.mubr.f32.mxu0 0.0
    %505 = vmatmul.mubr.f32.gmra.mrb[0].mxu0 %v435
    %v506 = vpop.f32.mrb[0].mxu0
    %v507 = vadd.f32 %v426, %v506
    %v508 = vpop.f32.mrb[0].mxu0
    %509 = vmatprep.mubr.f32.mxu0 0.0
    %510 = vmatmul.mubr.f32.gmra.mrb[0].mxu0 %v438
    %v511 = vpop.f32.mrb[0].mxu0
    %v512 = vadd.f32 %v431, %v511
    %v513 = vpop.f32.mrb[0].mxu0
    %514 = vdwg.mxu0
    %v515 = vld [vmem:[#allocation14] sm:$0x1]
    %v517 = vlaneseq
    %v518 = vshrl.u32 %v517, 7
    %v519 = vsub.s32 0, %v518
    %v520 = vrot.slane %v515, %v519
    %v522 = vadd.f32 %v507, %v520
    %v523 = vadd.f32 %v512, %v520
    %v524 = vmax.f32 %v522, 0.0
    %v525 = vmax.f32 %v523, 0.0
    %526 = vst.msk [vmem:[#allocation16] sm:$0xff] %vm352, %v524
    %527 = vst.msk [vmem:[#allocation16 + $0x8] sm:$0xff] %vm352, %v525
    %v528 = vxor.u32 %v340, 2147483648
    %v529 = vxor.u32 %v341, 2147483648
    %v530 = vmul.f32 %v528, 1.442695
    %v531 = vpow.pop %v530
    %v532 = vmul.f32 %v529, 1.442695
    %v533 = vpow.pop %v532
    %v534 = vadd.f32 %v531, 1.0
    %v535 = vadd.f32 %v533, 1.0
    %v536 = vrcp.pop %v534
    %v537 = vmul.f32 1.0, %v536
    %v538 = vrcp.pop %v535
    %v539 = vmul.f32 1.0, %v538
    %v540 = vld [vmem:[#allocation10] sm:$0xff]
    %v541 = vld [vmem:[#allocation10 + $0x8] sm:$0xff]
    %v542 = vld [vmem:[#allocation10 + $0x10] sm:$0xff]
    %v543 = vld [vmem:[#allocation10 + $0x18] sm:$0xff]
    %v545 = vsel %vm352, %v537, 0
    %v548 = vsel %vm352, %v539, 0
    %550 = vmatprep.subr.mxu0 0.0
    %551 = vmatpush1.msra.mxu0 %v540
    %552 = vmatprep.subr.mxu0 0.0
    %553 = vmatpush1.msra.mxu0 %v541
    %554 = vmatprep.subr.mxu0 0.0
    %555 = vmatpush1.msra.mxu0 %v542
    %556 = vmatprep.subr.mxu0 0.0
    %557 = vmatpush1.msra.mxu0 %v543
    %558 = vmatprep.subr.mxu0 0.0
    %559 = vmatpush1.msra.mxu0 0.0
    %560 = vmatprep.subr.mxu0 0.0
    %561 = vmatpush1.msra.mxu0 0.0
    %562 = vmatprep.subr.mxu0 0.0
    %563 = vmatpush1.msra.mxu0 0.0
    %564 = vmatprep.subr.mxu0 0.0
    %565 = vmatpush1.msra.mxu0 0.0
    %566 = vmatprep.subr.mxu0 0.0
    %567 = vmatpush1.msra.mxu0 0.0
    %568 = vmatprep.subr.mxu0 0.0
    %569 = vmatpush1.msra.mxu0 0.0
    %570 = vmatprep.subr.mxu0 0.0
    %571 = vmatpush1.msra.mxu0 0.0
    %572 = vmatprep.subr.mxu0 0.0
    %573 = vmatpush1.msra.mxu0 0.0
    %574 = vmatprep.subr.mxu0 0.0
    %575 = vmatpush1.msra.mxu0 0.0
    %576 = vmatprep.subr.mxu0 0.0
    %577 = vmatpush1.msra.mxu0 0.0
    %578 = vmatprep.subr.mxu0 0.0
    %579 = vmatpush1.msra.mxu0 0.0
    %580 = vmatprep.subr.mxu0 0.0
    %581 = vmatpush1.msra.mxu0 0.0
    %582 = vmatprep.subr.mxu0 0.0
    %583 = vmatpush1.msra.mxu0 0.0
    %584 = vmatprep.subr.mxu0 0.0
    %585 = vmatpush1.msra.mxu0 0.0
    %586 = vmatprep.subr.mxu0 0.0
    %587 = vmatpush1.msra.mxu0 0.0
    %588 = vmatprep.subr.mxu0 0.0
    %589 = vmatpush1.msra.mxu0 0.0
    %590 = vmatprep.subr.mxu0 0.0
    %591 = vmatpush1.msra.mxu0 0.0
    %592 = vmatprep.subr.mxu0 0.0
    %593 = vmatpush1.msra.mxu0 0.0
    %594 = vmatprep.subr.mxu0 0.0
    %595 = vmatpush1.msra.mxu0 0.0
    %596 = vmatprep.subr.mxu0 0.0
    %597 = vmatpush1.msra.mxu0 0.0
    %598 = vmatprep.subr.mxu0 0.0
    %599 = vmatpush1.msra.mxu0 0.0
    %600 = vmatprep.subr.mxu0 0.0
    %601 = vmatpush1.msra.mxu0 0.0
    %602 = vmatprep.subr.mxu0 0.0
    %603 = vmatpush1.msra.mxu0 0.0
    %604 = vmatprep.subr.mxu0 0.0
    %605 = vmatpush1.msra.mxu0 0.0
    %606 = vmatprep.subr.mxu0 0.0
    %607 = vmatpush1.msra.mxu0 0.0
    %608 = vmatprep.subr.mxu0 0.0
    %609 = vmatpush1.msra.mxu0 0.0
    %610 = vmatprep.subr.mxu0 0.0
    %611 = vmatpush1.msra.mxu0 0.0
    %612 = vmatprep.subr.mxu0 0.0
    %613 = vmatpush1.msra.mxu0 0.0
    %614 = vmatprep.mubr.f32.mxu0 0.0
    %615 = vmatmul.mubr.f32.gmra.mrb[0].mxu0 %v545
    %v616 = vpop.f32.mrb[0].mxu0
    %v617 = vadd.f32 0.0, %v616
    %v618 = vpop.f32.mrb[0].mxu0
    %619 = vmatprep.mubr.f32.mxu0 0.0
    %620 = vmatmul.mubr.f32.gmra.mrb[0].mxu0 %v548
    %v621 = vpop.f32.mrb[0].mxu0
    %v622 = vadd.f32 0.0, %v621
    %v623 = vpop.f32.mrb[0].mxu0
    %624 = vdwg.mxu0
    %v625 = vmul.f32 %v617, %v222
    %v626 = vmul.f32 %v622, %v227
    %627 = vst.msk [vmem:[#allocation17] sm:$0xff] %vm148, %v625
    %628 = vst.msk [vmem:[#allocation17 + $0x8] sm:$0xff] %vm148, %v626
    // Predicated region
    $region66: #{tpu_custom_call.1} parent=1 // pred_check
      _
    $region67: #{tpu_custom_call.1} parent=1 // pred_check_branch
      %630 = sbr.rel (0) target = $region69
    $region68: #{tpu_custom_call.1} parent=1 // pred_region
      %s632 = ssub.s32 256, 256
      %633 = vsyncadd [#allocation4], %s632
      %s634 = sshll.u32 [#allocation16], 4
      %s635 = int_to_ptr.vmem [resolvable:$true] %s634
      %640 = dma.vmem_to_hbm [thread:$0]  %s635, 256, %s8, [#allocation4], 128, 128, 8
    $region69: #{tpu_custom_call.1} parent=1 // pred_fallthru
      _
    // Predicated region
    $region70: #{tpu_custom_call.1} parent=1 // pred_check
      _
    $region71: #{tpu_custom_call.1} parent=1 // pred_check_branch
      %642 = sbr.rel (0) target = $region73
    $region72: #{tpu_custom_call.1} parent=1 // pred_region
      %s644 = ssub.s32 256, 256
      %645 = vsyncadd [#allocation18], %s644
      %s646 = sshll.u32 [#allocation17], 4
      %s647 = int_to_ptr.vmem [resolvable:$true] %s646
      %652 = dma.vmem_to_hbm [thread:$0]  %s647, 256, %s9, [#allocation18], 128, 128, 8
    $region73: #{tpu_custom_call.1} parent=1 // pred_fallthru
      _
    // Predicated region
    $region74: #{tpu_custom_call.1} parent=1 // pred_check
      _
    $region75: #{tpu_custom_call.1} parent=1 // pred_check_branch
      %654 = sbr.rel (0) target = $region77
    $region76: #{tpu_custom_call.1} parent=1 // pred_region
      %655 = dma.done [#allocation4], 256
    $region77: #{tpu_custom_call.1} parent=1 // pred_fallthru
      _
    // Predicated region
    $region78: #{tpu_custom_call.1} parent=1 // pred_check
      _
    $region79: #{tpu_custom_call.1} parent=1 // pred_check_branch
      %657 = sbr.rel (0) target = $region81
    $region80: #{tpu_custom_call.1} parent=1 // pred_region
      %658 = dma.done [#allocation18], 256
    $region81: #{tpu_custom_call.1} parent=1 // pred_fallthru
      _
    %659 = vsyncpa [#allocation3], 1
    %660 = vsyncpa [#allocation6], 1
    %661 = vsyncpa [#allocation9], 1
    %662 = vsyncpa [#allocation12], 1
    %663 = vsyncpa [#allocation15], 1
    %664 = vsyncpa [#allocation4], 1
    %665 = vsyncpa [#allocation18], 1

</llo_original>
